<compile_context>
chip_gen: v6e
topology: v6e:2x2x1
jax: 0.10.0
libtpu: 0.0.40
codegen_flags: <defaults>
</compile_context>

<pallas_src>
import functools

import jax
import jax.numpy as jnp
from jax import lax
from jax.experimental import pallas as pl
from jax.experimental.pallas import tpu as pltpu


def _lightgcn_kernel(r_ref, u_ref, i_ref, u_out_ref, i_out_ref, *, n_layers: int):
    """Fused LightGCN propagation + layer mean for one embedding-column tile."""
    r = r_ref[...]        # (Nu, Ni)  bf16, resident across the whole grid
    ego_u = u_ref[...]    # (Nu, TD)  f32
    ego_i = i_ref[...]    # (Ni, TD)  f32

    # Layer-0 contribution; layer sum kept in local f32 values (single store at end).
    acc_u = ego_u
    acc_i = ego_i

    for _ in range(n_layers):  # short static loop (n_ui_layers), unrolled
        new_u = jnp.dot(r, ego_i.astype(jnp.bfloat16),
                        preferred_element_type=jnp.float32)
        # new_i = R^T @ ego_u via a transposed-LHS contraction: avoids carrying a
        # separate R^T operand (2x less adjacency DMA / resident VMEM).
        new_i = lax.dot_general(r, ego_u.astype(jnp.bfloat16),
                                dimension_numbers=(((0,), (0,)), ((), ())),
                                preferred_element_type=jnp.float32)
        ego_u, ego_i = new_u, new_i
        acc_u = acc_u + new_u
        acc_i = acc_i + new_i

    scale = 1.0 / float(n_layers + 1)   # layer mean; f32 epilogue, folded into the store
    u_out_ref[...] = acc_u * scale
    i_out_ref[...] = acc_i * scale


def _round_up(x: int, m: int) -> int:
    return (x + m - 1) // m * m


def _pad2d(x, rows, cols, dtype):
    out = jnp.zeros((rows, cols), dtype)
    return out.at[: x.shape[0], : x.shape[1]].set(x.astype(dtype))


def _vmem_ceiling_bytes() -> int:
    """Per-generation VMEM request ceiling: physical capacity minus ~8 MiB headroom,
    never above ~110 MiB (v5e/v6e 128 MiB parts) -> ~56 MiB on v7x (64 MiB/TC)."""
    try:
        cap = int(pltpu.get_tpu_info().vmem_capacity_bytes)
    except Exception:
        cap = 128 << 20
    return min(max(cap - (8 << 20), 16 << 20), 110 << 20)


def _has_two_tensorcores() -> bool:
    """Conservative megacore detection (v4/v5p/v7x). Defaults to False (1 TC)."""
    try:
        kind = jax.devices()[0].device_kind.lower()
    except Exception:
        return False
    return any(tag in kind for tag in ("v4", "v5p", "v7", "tpu7"))


def lightgcn_forward(adj, user_emb, item_emb, n_layers, *, col_tile=256,
                     validate_adj=False):
    """Returns (u_g_embeddings, i_g_embeddings) exactly like LightGCN.forward.

    `adj` is the dense (N, N) normalized bipartite adjacency (zero diagonal
    blocks, symmetric off-diagonals, N = n_users + n_items).
    """
    n_users, d = user_emb.shape
    n_items = item_emb.shape[0]
    n = n_users + n_items
    assert adj.shape == (n, n)

    # Only the bipartite interaction block carries information: adj = [[0, R], [R^T, 0]].
    r = adj[:n_users, n_users:]
    if validate_adj:
        assert bool(jnp.all(adj[:n_users, :n_users] == 0)), "nonzero user-user block"
        assert bool(jnp.all(adj[n_users:, n_users:] == 0)), "nonzero item-item block"
        assert bool(jnp.allclose(adj[n_users:, :n_users], r.T)), "adj not symmetric"

    # MXU/layout-friendly padding: both Nu and Ni act as contraction dims (R and
    # its transposed-LHS use), so pad both to multiples of 128; D to lane multiples.
    nu_p = _round_up(max(n_users, 1), 128)
    ni_p = _round_up(max(n_items, 1), 128)
    d_p = _round_up(d, 128)

    col_tile = min(col_tile, d_p)
    if d_p % col_tile != 0:
        col_tile = 128
    # Split columns below the widest lane-dense tile only to feed a second
    # TensorCore on megacore parts; 1-TC chips keep the widest tile (less per-step
    # overhead, wider MXU N dim, fewer DMA descriptors).
    if _has_two_tensorcores() and d_p // col_tile < 2 and col_tile % 256 == 0:
        col_tile //= 2

    r_b = _pad2d(r, nu_p, ni_p, jnp.bfloat16)
    u0 = _pad2d(user_emb, nu_p, d_p, jnp.float32)
    i0 = _pad2d(item_emb, ni_p, d_p, jnp.float32)

    # VMEM budget: single-buffered bf16 R + double-buffered f32 ego/out tiles.
    adj_vmem = 2 * nu_p * ni_p                       # bf16 R, Buffered(1)
    tile_bytes = (nu_p + ni_p) * col_tile * 4
    io_vmem = 2 * 2 * tile_bytes                     # (in + out), double-buffered
    required = adj_vmem + io_vmem
    vmem_limit = min(_vmem_ceiling_bytes(),
                     max(32 << 20, int(1.25 * required) + (4 << 20)))

    # 2 MXU matmuls per layer; R fetched once (constant index_map), ego/out once.
    flops = 4 * n_layers * nu_p * ni_p * d_p
    bytes_accessed = 2 * nu_p * ni_p + 8 * (nu_p + ni_p) * d_p
    cost = pl.CostEstimate(flops=flops, transcendentals=0,
                           bytes_accessed=bytes_accessed)

    kernel = functools.partial(_lightgcn_kernel, n_layers=n_layers)

    u_all, i_all = pl.pallas_call(
        kernel,
        out_shape=(
            jax.ShapeDtypeStruct((nu_p, d_p), jnp.float32),
            jax.ShapeDtypeStruct((ni_p, d_p), jnp.float32),
        ),
        grid_spec=pltpu.PrefetchScalarGridSpec(
            num_scalar_prefetch=0,
            grid=(d_p // col_tile,),
            in_specs=[
                # R is grid-invariant -> single buffer (no benefit from double buffering).
                pl.BlockSpec((nu_p, ni_p), lambda j: (0, 0),
                             pipeline_mode=pl.Buffered(1)),
                pl.BlockSpec((nu_p, col_tile), lambda j: (0, j)),  # user ego tile
                pl.BlockSpec((ni_p, col_tile), lambda j: (0, j)),  # item ego tile
            ],
            out_specs=[
                pl.BlockSpec((nu_p, col_tile), lambda j: (0, j)),
                pl.BlockSpec((ni_p, col_tile), lambda j: (0, j)),
            ],
        ),
        compiler_params=pltpu.CompilerParams(
            dimension_semantics=("parallel",),
            vmem_limit_bytes=vmem_limit,
        ),
        cost_estimate=cost,
    )(r_b, u0, i0)

    return u_all[:n_users, :d], i_all[:n_items, :d]


def _xavier_uniform(key, shape, dtype=jnp.float32):
    fan_in, fan_out = shape[0], shape[1]
    bound = (6.0 / (fan_in + fan_out)) ** 0.5
    return jax.random.uniform(key, shape, dtype=dtype, minval=-bound, maxval=bound)


def _build_norm_adj(key, n_users, n_items, density=0.05):
    """Deterministic dense D^{-1/2} A D^{-1/2} bipartite adjacency."""
    r = (jax.random.uniform(key, (n_users, n_items)) < density).astype(jnp.float32)
    n = n_users + n_items
    a = jnp.zeros((n, n), dtype=jnp.float32)
    a = a.at[:n_users, n_users:].set(r)
    a = a.at[n_users:, :n_users].set(r.T)
    deg = jnp.sum(a, axis=1)
    d_inv_sqrt = jnp.where(deg > 0, 1.0 / jnp.sqrt(jnp.maximum(deg, 1e-12)), 0.0)
    return a * d_inv_sqrt[:, None] * d_inv_sqrt[None, :]


if __name__ == "__main__":
    # Small, deterministic configuration consistent with the module's __init__.
    n_users = 48
    n_items = 80
    embedding_dim = 256
    weight_size = [64, 64]          # => n_ui_layers = 2
    n_ui_layers = len(weight_size)

    key = jax.random.PRNGKey(0)
    k_u, k_i, k_adj = jax.random.split(key, 3)

    user_embedding = _xavier_uniform(k_u, (n_users, embedding_dim))
    item_id_embedding = _xavier_uniform(k_i, (n_items, embedding_dim))
    adj = _build_norm_adj(k_adj, n_users, n_items)

    u_g, i_g = lightgcn_forward(adj, user_embedding, item_id_embedding,
                                n_ui_layers, validate_adj=True)
    jax.block_until_ready((u_g, i_g))

    # Reference check in plain JAX (same math as the PyTorch forward), full f32.
    ego = jnp.concatenate([user_embedding, item_id_embedding], axis=0)
    layers = [ego]
    for _ in range(n_ui_layers):
        ego = adj @ ego
        layers.append(ego)
    ref = jnp.mean(jnp.stack(layers, axis=1), axis=1)

    out = jnp.concatenate([u_g, i_g], axis=0)
    assert u_g.shape == (n_users, embedding_dim)
    assert i_g.shape == (n_items, embedding_dim)
    # bf16 matmul operands -> slightly looser tolerance than the pure-f32 path.
    err = float(jnp.max(jnp.abs(out - ref)))
    assert jnp.allclose(out, ref, atol=1e-2, rtol=1e-2), err

    print("KERNEL_OK")
</pallas_src>

<mosaic_0001>
module attributes {stable_mosaic.version = 11 : i64} {
  func.func @_lightgcn_kernel(%arg0: i32, %arg1: memref<128x128xbf16, #tpu.memory_space<vmem>>, %arg2: memref<128x256xf32, #tpu.memory_space<vmem>>, %arg3: memref<128x256xf32, #tpu.memory_space<vmem>>, %arg4: memref<128x256xf32, #tpu.memory_space<vmem>>, %arg5: memref<128x256xf32, #tpu.memory_space<vmem>>) attributes {dimension_semantics = [#tpu.dimension_semantics<parallel>], iteration_bounds = array<i64: 1>, scalar_prefetch = 0 : i64, scratch_operands = 0 : i64, tpu.core_type = #tpu.core_type<tc>, window_params = [{pipeline_mode = #tpu.pipeline_mode<synchronous>, transform_indices = @transform_0, window_bounds = array<i64: 128, 128>}, {transform_indices = @transform_1, window_bounds = array<i64: 128, 256>}, {transform_indices = @transform_2, window_bounds = array<i64: 128, 256>}, {transform_indices = @transform_3, window_bounds = array<i64: 128, 256>}, {transform_indices = @transform_4, window_bounds = array<i64: 128, 256>}]} {
    %c0 = arith.constant 0 : index
    %c0_0 = arith.constant 0 : index
    %0 = vector.load %arg1[%c0, %c0_0] : memref<128x128xbf16, #tpu.memory_space<vmem>>, vector<128x128xbf16>
    %c0_1 = arith.constant 0 : index
    %c0_2 = arith.constant 0 : index
    %1 = vector.load %arg2[%c0_1, %c0_2] : memref<128x256xf32, #tpu.memory_space<vmem>>, vector<128x256xf32>
    %c0_3 = arith.constant 0 : index
    %c0_4 = arith.constant 0 : index
    %2 = vector.load %arg3[%c0_3, %c0_4] : memref<128x256xf32, #tpu.memory_space<vmem>>, vector<128x256xf32>
    %3 = arith.truncf %2 : vector<128x256xf32> to vector<128x256xbf16>
    %cst = arith.constant dense<0.000000e+00> : vector<128x256xf32>
    %4 = tpu.matmul %0, %3, %cst {dimension_numbers = #tpu.dot_dimension_numbers<[1], [0], [0], [1], [0, 0, 1, 1], [], []>} : vector<128x128xbf16>, vector<128x256xbf16>, vector<128x256xf32> -> vector<128x256xf32>
    %5 = arith.truncf %1 : vector<128x256xf32> to vector<128x256xbf16>
    %cst_5 = arith.constant dense<0.000000e+00> : vector<128x256xf32>
    %6 = tpu.matmul %0, %5, %cst_5 {dimension_numbers = #tpu.dot_dimension_numbers<[0], [0], [1], [1], [0, 1, 1, 1], [], []>} : vector<128x128xbf16>, vector<128x256xbf16>, vector<128x256xf32> -> vector<128x256xf32>
    %7 = arith.addf %1, %4 : vector<128x256xf32>
    %8 = arith.addf %2, %6 : vector<128x256xf32>
    %9 = arith.truncf %6 : vector<128x256xf32> to vector<128x256xbf16>
    %cst_6 = arith.constant dense<0.000000e+00> : vector<128x256xf32>
    %10 = tpu.matmul %0, %9, %cst_6 {dimension_numbers = #tpu.dot_dimension_numbers<[1], [0], [0], [1], [0, 0, 1, 1], [], []>} : vector<128x128xbf16>, vector<128x256xbf16>, vector<128x256xf32> -> vector<128x256xf32>
    %11 = arith.truncf %4 : vector<128x256xf32> to vector<128x256xbf16>
    %cst_7 = arith.constant dense<0.000000e+00> : vector<128x256xf32>
    %12 = tpu.matmul %0, %11, %cst_7 {dimension_numbers = #tpu.dot_dimension_numbers<[0], [0], [1], [1], [0, 1, 1, 1], [], []>} : vector<128x128xbf16>, vector<128x256xbf16>, vector<128x256xf32> -> vector<128x256xf32>
    %13 = arith.addf %7, %10 : vector<128x256xf32>
    %14 = arith.addf %8, %12 : vector<128x256xf32>
    %cst_8 = arith.constant 0.333333343 : f32
    %15 = vector.broadcast %cst_8 : f32 to vector<128x256xf32>
    %16 = arith.mulf %13, %15 : vector<128x256xf32>
    %c0_9 = arith.constant 0 : index
    %c0_10 = arith.constant 0 : index
    %17 = vector.load %arg4[%c0_9, %c0_10] : memref<128x256xf32, #tpu.memory_space<vmem>>, vector<128x256xf32>
    tpu.vector_store %arg4[%c0_9, %c0_10], %16 {strides = array<i32>} : memref<128x256xf32, #tpu.memory_space<vmem>>, vector<128x256xf32>,
    %cst_11 = arith.constant 0.333333343 : f32
    %18 = vector.broadcast %cst_11 : f32 to vector<128x256xf32>
    %19 = arith.mulf %14, %18 : vector<128x256xf32>
    %c0_12 = arith.constant 0 : index
    %c0_13 = arith.constant 0 : index
    %20 = vector.load %arg5[%c0_12, %c0_13] : memref<128x256xf32, #tpu.memory_space<vmem>>, vector<128x256xf32>
    tpu.vector_store %arg5[%c0_12, %c0_13], %19 {strides = array<i32>} : memref<128x256xf32, #tpu.memory_space<vmem>>, vector<128x256xf32>,
    return
  }
  func.func @transform_0(%arg0: i32) -> (i32, i32) {
    %c0_i32 = arith.constant 0 : i32
    %c0_i32_0 = arith.constant 0 : i32
    %c0_i32_1 = arith.constant 0 : i32
    return %c0_i32, %c0_i32_0 : i32, i32
  }
  func.func @transform_1(%arg0: i32) -> (i32, i32) {
    %c0_i32 = arith.constant 0 : i32
    %c0_i32_0 = arith.constant 0 : i32
    return %c0_i32, %arg0 : i32, i32
  }
  func.func @transform_2(%arg0: i32) -> (i32, i32) {
    %c0_i32 = arith.constant 0 : i32
    %c0_i32_0 = arith.constant 0 : i32
    return %c0_i32, %arg0 : i32, i32
  }
  func.func @transform_3(%arg0: i32) -> (i32, i32) {
    %c0_i32 = arith.constant 0 : i32
    %c0_i32_0 = arith.constant 0 : i32
    return %c0_i32, %arg0 : i32, i32
  }
  func.func @transform_4(%arg0: i32) -> (i32, i32) {
    %c0_i32 = arith.constant 0 : i32
    %c0_i32_0 = arith.constant 0 : i32
    return %c0_i32, %arg0 : i32, i32
  }
}

</mosaic_0001>

<llo_original>
// kernel: tpu_custom_call.1
$region0: #{tpu_custom_call.1}
  #allocation0 [shape = 'u32[]', space=smem, size = 0x4, offset = 0x4, fixed_abs, tag = 'smem constant byte address 0x4 - core index']
  #allocation1 [shape = 'u32[144,128]{1,0:T(1,128)}', space=vmem, size = 0x12000, scoped, tag = 'internal scratch']
  %s0 = inlined_call_operand.hbm [shape: bf16[128,128], index: 0, kind: input, shape index: {}]
  %s1 = inlined_call_operand.hbm [shape: f32[128,256], index: 1, kind: input, shape index: {}]
  %s2 = inlined_call_operand.hbm [shape: f32[128,256], index: 2, kind: input, shape index: {}]
  %s3 = inlined_call_operand.hbm [shape: f32[128,256], index: 3, kind: output, shape index: {0}]
  %s4 = inlined_call_operand.hbm [shape: f32[128,256], index: 4, kind: output, shape index: {1}]
  %5 = xla_tuple %s3, %s4
  %s6 = sld [smem:[#allocation0]]
  $region42: #{tpu_custom_call.1} parent=0
    _
  %s8 = ssub.s32 1, %s6
  %s9 = scalar_select 0, %s8, %s6
  $region1: #{tpu_custom_call.1} parent=0
    #allocation2 [shape = 'u8[32768]{0}', space=vmem, size = 0x8000, scoped, tag = 'input window, operand 0, single buffered']
    #allocation3 [shape = 's32[1]{0}', space=sflag, size = 0x4, scoped, tag = 'scoped memory for tpu_custom_call.1']
    #allocation4 [shape = 's32[1]{0}', space=sflag, size = 0x4, scoped, tag = 'scoped memory for tpu_custom_call.1']
    #allocation5 [shape = 'u8[131072]{0}', space=vmem, size = 0x20000, scoped, tag = 'input window, operand 1, single buffered']
    #allocation6 [shape = 's32[1]{0}', space=sflag, size = 0x4, scoped, tag = 'scoped memory for tpu_custom_call.1']
    #allocation7 [shape = 'u8[131072]{0}', space=vmem, size = 0x20000, scoped, tag = 'input window, operand 2, single buffered']
    #allocation8 [shape = 'u8[131072]{0}', space=vmem, size = 0x20000, scoped, tag = 'output window, operand 0, single buffered']
    #allocation9 [shape = 'u8[131072]{0}', space=vmem, size = 0x20000, scoped, tag = 'output window, operand 1, single buffered']
    #allocation10 [shape = 's32[1]{0}', space=sflag, size = 0x4, scoped, tag = 'scoped memory for tpu_custom_call.1']
    %10 = vsyncpa [#allocation3], 0
    %11 = vsyncpa [#allocation6], 0
    %12 = vsyncpa [#allocation4], 0
    %13 = vsyncpa [#allocation10], 0
    // Predicated region
    $region2: #{tpu_custom_call.1} parent=1 // pred_check
      _
    $region3: #{tpu_custom_call.1} parent=1 // pred_check_branch
      %15 = sbr.rel (0) target = $region5
    $region4: #{tpu_custom_call.1} parent=1 // pred_region
      %s17 = ssub.s32 1024, 1024
      %18 = vsyncadd [#allocation3], %s17
      %s19 = sshll.u32 [#allocation2], 4
      %s20 = int_to_ptr.vmem [resolvable:$true] %s19
      %25 = dma.hbm_to_vmem [thread:$0]  %s0, 1024, %s20, [#allocation3], 64, 64, 4
    $region5: #{tpu_custom_call.1} parent=1 // pred_fallthru
      _
    // Predicated region
    $region6: #{tpu_custom_call.1} parent=1 // pred_check
      _
    $region7: #{tpu_custom_call.1} parent=1 // pred_check_branch
      %27 = sbr.rel (0) target = $region9
    $region8: #{tpu_custom_call.1} parent=1 // pred_region
      %s29 = ssub.s32 4096, 4096
      %30 = vsyncadd [#allocation6], %s29
      %s31 = sshll.u32 [#allocation5], 4
      %s32 = int_to_ptr.vmem [resolvable:$true] %s31
      %37 = dma.hbm_to_vmem [thread:$0]  %s1, 4096, %s32, [#allocation6], 256, 256, 16
    $region9: #{tpu_custom_call.1} parent=1 // pred_fallthru
      _
    // Predicated region
    $region10: #{tpu_custom_call.1} parent=1 // pred_check
      _
    $region11: #{tpu_custom_call.1} parent=1 // pred_check_branch
      %39 = sbr.rel (0) target = $region13
    $region12: #{tpu_custom_call.1} parent=1 // pred_region
      %s41 = ssub.s32 4096, 4096
      %42 = vsyncadd [#allocation6], %s41
      %s43 = sshll.u32 [#allocation7], 4
      %s44 = int_to_ptr.vmem [resolvable:$true] %s43
      %49 = dma.hbm_to_vmem [thread:$0]  %s2, 4096, %s44, [#allocation6], 256, 256, 16
    $region13: #{tpu_custom_call.1} parent=1 // pred_fallthru
      _
    // Predicated region
    $region14: #{tpu_custom_call.1} parent=1 // pred_check
      _
    $region15: #{tpu_custom_call.1} parent=1 // pred_check_branch
      %51 = sbr.rel (0) target = $region17
    $region16: #{tpu_custom_call.1} parent=1 // pred_region
      %52 = dma.done [#allocation3], 1024
    $region17: #{tpu_custom_call.1} parent=1 // pred_fallthru
      _
    // Predicated region
    $region18: #{tpu_custom_call.1} parent=1 // pred_check
      _
    $region19: #{tpu_custom_call.1} parent=1 // pred_check_branch
      %54 = sbr.rel (0) target = $region21
    $region20: #{tpu_custom_call.1} parent=1 // pred_region
      %55 = dma.done [#allocation6], 4096
    $region21: #{tpu_custom_call.1} parent=1 // pred_fallthru
      _
    // Predicated region
    $region22: #{tpu_custom_call.1} parent=1 // pred_check
      _
    $region23: #{tpu_custom_call.1} parent=1 // pred_check_branch
      %57 = sbr.rel (0) target = $region25
    $region24: #{tpu_custom_call.1} parent=1 // pred_region
      %58 = dma.done [#allocation6], 4096
    $region25: #{tpu_custom_call.1} parent=1 // pred_fallthru
      _
    %v60 = vld [vmem:[#allocation2] sm:$0xf]
    %v61 = vld [vmem:[#allocation2 + $0x4] sm:$0xf]
    %v62 = vld [vmem:[#allocation2 + $0x8] sm:$0xf]
    %v63 = vld [vmem:[#allocation2 + $0xc] sm:$0xf]
    %v64 = vld [vmem:[#allocation2 + $0x10] sm:$0xf]
    %v65 = vld [vmem:[#allocation2 + $0x14] sm:$0xf]
    %v66 = vld [vmem:[#allocation2 + $0x18] sm:$0xf]
    %v67 = vld [vmem:[#allocation2 + $0x1c] sm:$0xf]
    %v68 = vld [vmem:[#allocation2 + $0x20] sm:$0xf]
    %v69 = vld [vmem:[#allocation2 + $0x24] sm:$0xf]
    %v70 = vld [vmem:[#allocation2 + $0x28] sm:$0xf]
    %v71 = vld [vmem:[#allocation2 + $0x2c] sm:$0xf]
    %v72 = vld [vmem:[#allocation2 + $0x30] sm:$0xf]
    %v73 = vld [vmem:[#allocation2 + $0x34] sm:$0xf]
    %v74 = vld [vmem:[#allocation2 + $0x38] sm:$0xf]
    %v75 = vld [vmem:[#allocation2 + $0x3c] sm:$0xf]
    %v76 = vld [vmem:[#allocation5] sm:$0xff]
    %v77 = vld [vmem:[#allocation5 + $0x8] sm:$0xff]
    %v78 = vld [vmem:[#allocation5 + $0x10] sm:$0xff]
    %v79 = vld [vmem:[#allocation5 + $0x18] sm:$0xff]
    %v80 = vld [vmem:[#allocation5 + $0x20] sm:$0xff]
    %v81 = vld [vmem:[#allocation5 + $0x28] sm:$0xff]
    %v82 = vld [vmem:[#allocation5 + $0x30] sm:$0xff]
    %v83 = vld [vmem:[#allocation5 + $0x38] sm:$0xff]
    %v84 = vld [vmem:[#allocation5 + $0x40] sm:$0xff]
    %v85 = vld [vmem:[#allocation5 + $0x48] sm:$0xff]
    %v86 = vld [vmem:[#allocation5 + $0x50] sm:$0xff]
    %v87 = vld [vmem:[#allocation5 + $0x58] sm:$0xff]
    %v88 = vld [vmem:[#allocation5 + $0x60] sm:$0xff]
    %v89 = vld [vmem:[#allocation5 + $0x68] sm:$0xff]
    %v90 = vld [vmem:[#allocation5 + $0x70] sm:$0xff]
    %v91 = vld [vmem:[#allocation5 + $0x78] sm:$0xff]
    %v92 = vld [vmem:[#allocation5 + $0x80] sm:$0xff]
    %v93 = vld [vmem:[#allocation5 + $0x88] sm:$0xff]
    %v94 = vld [vmem:[#allocation5 + $0x90] sm:$0xff]
    %v95 = vld [vmem:[#allocation5 + $0x98] sm:$0xff]
    %v96 = vld [vmem:[#allocation5 + $0xa0] sm:$0xff]
    %v97 = vld [vmem:[#allocation5 + $0xa8] sm:$0xff]
    %v98 = vld [vmem:[#allocation5 + $0xb0] sm:$0xff]
    %v99 = vld [vmem:[#allocation5 + $0xb8] sm:$0xff]
    %v100 = vld [vmem:[#allocation5 + $0xc0] sm:$0xff]
    %v101 = vld [vmem:[#allocation5 + $0xc8] sm:$0xff]
    %v102 = vld [vmem:[#allocation5 + $0xd0] sm:$0xff]
    %v103 = vld [vmem:[#allocation5 + $0xd8] sm:$0xff]
    %v104 = vld [vmem:[#allocation5 + $0xe0] sm:$0xff]
    %v105 = vld [vmem:[#allocation5 + $0xe8] sm:$0xff]
    %v106 = vld [vmem:[#allocation5 + $0xf0] sm:$0xff]
    %v107 = vld [vmem:[#allocation5 + $0xf8] sm:$0xff]
    %v108 = vld [vmem:[#allocation7] sm:$0xff]
    %v109 = vld [vmem:[#allocation7 + $0x8] sm:$0xff]
    %v110 = vld [vmem:[#allocation7 + $0x10] sm:$0xff]
    %v111 = vld [vmem:[#allocation7 + $0x18] sm:$0xff]
    %v112 = vld [vmem:[#allocation7 + $0x20] sm:$0xff]
    %v113 = vld [vmem:[#allocation7 + $0x28] sm:$0xff]
    %v114 = vld [vmem:[#allocation7 + $0x30] sm:$0xff]
    %v115 = vld [vmem:[#allocation7 + $0x38] sm:$0xff]
    %v116 = vld [vmem:[#allocation7 + $0x40] sm:$0xff]
    %v117 = vld [vmem:[#allocation7 + $0x48] sm:$0xff]
    %v118 = vld [vmem:[#allocation7 + $0x50] sm:$0xff]
    %v119 = vld [vmem:[#allocation7 + $0x58] sm:$0xff]
    %v120 = vld [vmem:[#allocation7 + $0x60] sm:$0xff]
    %v121 = vld [vmem:[#allocation7 + $0x68] sm:$0xff]
    %v122 = vld [vmem:[#allocation7 + $0x70] sm:$0xff]
    %v123 = vld [vmem:[#allocation7 + $0x78] sm:$0xff]
    %v124 = vld [vmem:[#allocation7 + $0x80] sm:$0xff]
    %v125 = vld [vmem:[#allocation7 + $0x88] sm:$0xff]
    %v126 = vld [vmem:[#allocation7 + $0x90] sm:$0xff]
    %v127 = vld [vmem:[#allocation7 + $0x98] sm:$0xff]
    %v128 = vld [vmem:[#allocation7 + $0xa0] sm:$0xff]
    %v129 = vld [vmem:[#allocation7 + $0xa8] sm:$0xff]
    %v130 = vld [vmem:[#allocation7 + $0xb0] sm:$0xff]
    %v131 = vld [vmem:[#allocation7 + $0xb8] sm:$0xff]
    %v132 = vld [vmem:[#allocation7 + $0xc0] sm:$0xff]
    %v133 = vld [vmem:[#allocation7 + $0xc8] sm:$0xff]
    %v134 = vld [vmem:[#allocation7 + $0xd0] sm:$0xff]
    %v135 = vld [vmem:[#allocation7 + $0xd8] sm:$0xff]
    %v136 = vld [vmem:[#allocation7 + $0xe0] sm:$0xff]
    %v137 = vld [vmem:[#allocation7 + $0xe8] sm:$0xff]
    %v138 = vld [vmem:[#allocation7 + $0xf0] sm:$0xff]
    %v139 = vld [vmem:[#allocation7 + $0xf8] sm:$0xff]
    %v140 = vpack.c.bf16 %v110, %v108
    %v141 = vpack.c.bf16 %v111, %v109
    %v142 = vpack.c.bf16 %v114, %v112
    %v143 = vpack.c.bf16 %v115, %v113
    %v144 = vpack.c.bf16 %v118, %v116
    %v145 = vpack.c.bf16 %v119, %v117
    %v146 = vpack.c.bf16 %v122, %v120
    %v147 = vpack.c.bf16 %v123, %v121
    %v148 = vpack.c.bf16 %v126, %v124
    %v149 = vpack.c.bf16 %v127, %v125
    %v150 = vpack.c.bf16 %v130, %v128
    %v151 = vpack.c.bf16 %v131, %v129
    %v152 = vpack.c.bf16 %v134, %v132
    %v153 = vpack.c.bf16 %v135, %v133
    %v154 = vpack.c.bf16 %v138, %v136
    %v155 = vpack.c.bf16 %v139, %v137
    %v172 = vunpack.c.l.b16 %v60
    %v173 = vunpack.c.l.b16 %v61
    %v174 = vunpack.c.l.b16 %v62
    %v175 = vunpack.c.l.b16 %v63
    %v176 = vunpack.c.l.b16 %v64
    %v177 = vunpack.c.l.b16 %v65
    %v178 = vunpack.c.l.b16 %v66
    %v179 = vunpack.c.l.b16 %v67
    %v180 = vunpack.c.l.b16 %v68
    %v181 = vunpack.c.l.b16 %v69
    %v182 = vunpack.c.l.b16 %v70
    %v183 = vunpack.c.l.b16 %v71
    %v184 = vunpack.c.l.b16 %v72
    %v185 = vunpack.c.l.b16 %v73
    %v186 = vunpack.c.l.b16 %v74
    %v187 = vunpack.c.l.b16 %v75
    %v188 = vpack.c.b16 %v173, %v172
    %v189 = vpack.c.b16 %v175, %v174
    %v190 = vpack.c.b16 %v177, %v176
    %v191 = vpack.c.b16 %v179, %v178
    %v192 = vpack.c.b16 %v181, %v180
    %v193 = vpack.c.b16 %v183, %v182
    %v194 = vpack.c.b16 %v185, %v184
    %v195 = vpack.c.b16 %v187, %v186
    %204 = vmatprep.subr.bf16.mxu0 %v155
    %205 = vmatpush1.bf16.msra.mxu0 %v154
    %206 = vmatprep.subr.bf16.mxu0 %v153
    %207 = vmatpush1.bf16.msra.mxu0 %v152
    %208 = vmatprep.subr.bf16.mxu0 %v151
    %209 = vmatpush1.bf16.msra.mxu0 %v150
    %210 = vmatprep.subr.bf16.mxu0 %v149
    %211 = vmatpush1.bf16.msra.mxu0 %v148
    %212 = vmatprep.subr.bf16.mxu0 %v147
    %213 = vmatpush1.bf16.msra.mxu0 %v146
    %214 = vmatprep.subr.bf16.mxu0 %v145
    %215 = vmatpush1.bf16.msra.mxu0 %v144
    %216 = vmatprep.subr.bf16.mxu0 %v143
    %217 = vmatpush1.bf16.msra.mxu0 %v142
    %218 = vmatprep.subr.bf16.mxu0 %v141
    %219 = vmatpush1.bf16.msra.mxu0 %v140
    %220 = vmatprep.subr.bf16.mxu0 0
    %221 = vmatpush2.bf16.msra.mxu0 0
    %222 = vmatprep.subr.bf16.mxu0 0
    %223 = vmatpush2.bf16.msra.mxu0 0
    %224 = vmatprep.subr.bf16.mxu0 0
    %225 = vmatpush2.bf16.msra.mxu0 0
    %226 = vmatprep.subr.bf16.mxu0 0
    %227 = vmatpush2.bf16.msra.mxu0 0
    %228 = vmatprep.subr.bf16.mxu0 0
    %229 = vmatpush2.bf16.msra.mxu0 0
    %230 = vmatprep.subr.bf16.mxu0 0
    %231 = vmatpush2.bf16.msra.mxu0 0
    %232 = vmatprep.subr.bf16.mxu0 0
    %233 = vmatpush2.bf16.msra.mxu0 0
    %234 = vmatprep.subr.bf16.mxu0 0
    %235 = vmatpush2.bf16.msra.mxu0 0
    %236 = vmatprep.mubr.bf16.mxu0 0
    %237 = vmatmul.mubr.bf16.gmra.mxu0 %v188
    %v238 = vpop.f32.mrf.mxu0
    %v239 = vadd.f32 0.0, %v238
    %v240 = vpop.f32.mrf.mxu0
    %v241 = vadd.f32 0.0, %v240
    %v242 = vpop.f32.mrf.mxu0
    %v243 = vadd.f32 0.0, %v242
    %v244 = vpop.f32.mrf.mxu0
    %v245 = vadd.f32 0.0, %v244
    %246 = vmatprep.mubr.bf16.mxu0 0
    %247 = vmatmul.mubr.bf16.gmra.mxu0 %v189
    %v248 = vpop.f32.mrf.mxu0
    %v249 = vadd.f32 0.0, %v248
    %v250 = vpop.f32.mrf.mxu0
    %v251 = vadd.f32 0.0, %v250
    %v252 = vpop.f32.mrf.mxu0
    %v253 = vadd.f32 0.0, %v252
    %v254 = vpop.f32.mrf.mxu0
    %v255 = vadd.f32 0.0, %v254
    %256 = vmatprep.mubr.bf16.mxu0 0
    %257 = vmatmul.mubr.bf16.gmra.mxu0 %v190
    %v258 = vpop.f32.mrf.mxu0
    %v259 = vadd.f32 0.0, %v258
    %v260 = vpop.f32.mrf.mxu0
    %v261 = vadd.f32 0.0, %v260
    %v262 = vpop.f32.mrf.mxu0
    %v263 = vadd.f32 0.0, %v262
    %v264 = vpop.f32.mrf.mxu0
    %v265 = vadd.f32 0.0, %v264
    %266 = vmatprep.mubr.bf16.mxu0 0
    %267 = vmatmul.mubr.bf16.gmra.mxu0 %v191
    %v268 = vpop.f32.mrf.mxu0
    %v269 = vadd.f32 0.0, %v268
    %v270 = vpop.f32.mrf.mxu0
    %v271 = vadd.f32 0.0, %v270
    %v272 = vpop.f32.mrf.mxu0
    %v273 = vadd.f32 0.0, %v272
    %v274 = vpop.f32.mrf.mxu0
    %v275 = vadd.f32 0.0, %v274
    %276 = vmatprep.mubr.bf16.mxu0 0
    %277 = vmatmul.mubr.bf16.gmra.mxu0 %v192
    %v278 = vpop.f32.mrf.mxu0
    %v279 = vadd.f32 0.0, %v278
    %v280 = vpop.f32.mrf.mxu0
    %v281 = vadd.f32 0.0, %v280
    %v282 = vpop.f32.mrf.mxu0
    %v283 = vadd.f32 0.0, %v282
    %v284 = vpop.f32.mrf.mxu0
    %v285 = vadd.f32 0.0, %v284
    %286 = vmatprep.mubr.bf16.mxu0 0
    %287 = vmatmul.mubr.bf16.gmra.mxu0 %v193
    %v288 = vpop.f32.mrf.mxu0
    %v289 = vadd.f32 0.0, %v288
    %v290 = vpop.f32.mrf.mxu0
    %v291 = vadd.f32 0.0, %v290
    %v292 = vpop.f32.mrf.mxu0
    %v293 = vadd.f32 0.0, %v292
    %v294 = vpop.f32.mrf.mxu0
    %v295 = vadd.f32 0.0, %v294
    %296 = vmatprep.mubr.bf16.mxu0 0
    %297 = vmatmul.mubr.bf16.gmra.mxu0 %v194
    %v298 = vpop.f32.mrf.mxu0
    %v299 = vadd.f32 0.0, %v298
    %v300 = vpop.f32.mrf.mxu0
    %v301 = vadd.f32 0.0, %v300
    %v302 = vpop.f32.mrf.mxu0
    %v303 = vadd.f32 0.0, %v302
    %v304 = vpop.f32.mrf.mxu0
    %v305 = vadd.f32 0.0, %v304
    %306 = vmatprep.mubr.bf16.mxu0 0
    %307 = vmatmul.mubr.bf16.gmra.mxu0 %v195
    %v308 = vpop.f32.mrf.mxu0
    %v309 = vadd.f32 0.0, %v308
    %v310 = vpop.f32.mrf.mxu0
    %v311 = vadd.f32 0.0, %v310
    %v312 = vpop.f32.mrf.mxu0
    %v313 = vadd.f32 0.0, %v312
    %v314 = vpop.f32.mrf.mxu0
    %v315 = vadd.f32 0.0, %v314
    %316 = vdwg.mxu0
    %v317 = vpack.c.bf16 %v78, %v76
    %v318 = vpack.c.bf16 %v79, %v77
    %v319 = vpack.c.bf16 %v82, %v80
    %v320 = vpack.c.bf16 %v83, %v81
    %v321 = vpack.c.bf16 %v86, %v84
    %v322 = vpack.c.bf16 %v87, %v85
    %v323 = vpack.c.bf16 %v90, %v88
    %v324 = vpack.c.bf16 %v91, %v89
    %v325 = vpack.c.bf16 %v94, %v92
    %v326 = vpack.c.bf16 %v95, %v93
    %v327 = vpack.c.bf16 %v98, %v96
    %v328 = vpack.c.bf16 %v99, %v97
    %v329 = vpack.c.bf16 %v102, %v100
    %v330 = vpack.c.bf16 %v103, %v101
    %v331 = vpack.c.bf16 %v106, %v104
    %v332 = vpack.c.bf16 %v107, %v105
    %333 = vxpose.xlu0.c.b16.start [1/8] %v188, 128
    %334 = vxpose.xlu0.c.b16.cont [2/8] %v189, 128
    %335 = vxpose.xlu0.c.b16.cont [3/8] %v190, 128
    %336 = vxpose.xlu0.c.b16.cont [4/8] %v191, 128
    %337 = vxpose.xlu0.c.b16.cont [5/8] %v192, 128
    %338 = vxpose.xlu0.c.b16.cont [6/8] %v193, 128
    %339 = vxpose.xlu0.c.b16.cont [7/8] %v194, 128
    %340 = vxpose.xlu0.c.b16.end [8/8] %v195, 128
    %v341 = vpop.trf.xlu0
    %v342 = vpop.trf.xlu0
    %v343 = vpop.trf.xlu0
    %v344 = vpop.trf.xlu0
    %v345 = vpop.trf.xlu0
    %v346 = vpop.trf.xlu0
    %v347 = vpop.trf.xlu0
    %v348 = vpop.trf.xlu0
    %349 = vmatprep.subr.bf16.mxu0 %v332
    %350 = vmatpush1.bf16.msra.mxu0 %v331
    %351 = vmatprep.subr.bf16.mxu0 %v330
    %352 = vmatpush1.bf16.msra.mxu0 %v329
    %353 = vmatprep.subr.bf16.mxu0 %v328
    %354 = vmatpush1.bf16.msra.mxu0 %v327
    %355 = vmatprep.subr.bf16.mxu0 %v326
    %356 = vmatpush1.bf16.msra.mxu0 %v325
    %357 = vmatprep.subr.bf16.mxu0 %v324
    %358 = vmatpush1.bf16.msra.mxu0 %v323
    %359 = vmatprep.subr.bf16.mxu0 %v322
    %360 = vmatpush1.bf16.msra.mxu0 %v321
    %361 = vmatprep.subr.bf16.mxu0 %v320
    %362 = vmatpush1.bf16.msra.mxu0 %v319
    %363 = vmatprep.subr.bf16.mxu0 %v318
    %364 = vmatpush1.bf16.msra.mxu0 %v317
    %365 = vmatprep.subr.bf16.mxu0 0
    %366 = vmatpush2.bf16.msra.mxu0 0
    %367 = vmatprep.subr.bf16.mxu0 0
    %368 = vmatpush2.bf16.msra.mxu0 0
    %369 = vmatprep.subr.bf16.mxu0 0
    %370 = vmatpush2.bf16.msra.mxu0 0
    %371 = vmatprep.subr.bf16.mxu0 0
    %372 = vmatpush2.bf16.msra.mxu0 0
    %373 = vmatprep.subr.bf16.mxu0 0
    %374 = vmatpush2.bf16.msra.mxu0 0
    %375 = vmatprep.subr.bf16.mxu0 0
    %376 = vmatpush2.bf16.msra.mxu0 0
    %377 = vmatprep.subr.bf16.mxu0 0
    %378 = vmatpush2.bf16.msra.mxu0 0
    %379 = vmatprep.subr.bf16.mxu0 0
    %380 = vmatpush2.bf16.msra.mxu0 0
    %381 = vmatprep.mubr.bf16.mxu0 0
    %382 = vmatmul.mubr.bf16.gmra.mxu0 %v341
    %v383 = vpop.f32.mrf.mxu0
    %v384 = vadd.f32 0.0, %v383
    %v385 = vpop.f32.mrf.mxu0
    %v386 = vadd.f32 0.0, %v385
    %v387 = vpop.f32.mrf.mxu0
    %v388 = vadd.f32 0.0, %v387
    %v389 = vpop.f32.mrf.mxu0
    %v390 = vadd.f32 0.0, %v389
    %391 = vmatprep.mubr.bf16.mxu0 0
    %392 = vmatmul.mubr.bf16.gmra.mxu0 %v342
    %v393 = vpop.f32.mrf.mxu0
    %v394 = vadd.f32 0.0, %v393
    %v395 = vpop.f32.mrf.mxu0
    %v396 = vadd.f32 0.0, %v395
    %v397 = vpop.f32.mrf.mxu0
    %v398 = vadd.f32 0.0, %v397
    %v399 = vpop.f32.mrf.mxu0
    %v400 = vadd.f32 0.0, %v399
    %401 = vmatprep.mubr.bf16.mxu0 0
    %402 = vmatmul.mubr.bf16.gmra.mxu0 %v343
    %v403 = vpop.f32.mrf.mxu0
    %v404 = vadd.f32 0.0, %v403
    %v405 = vpop.f32.mrf.mxu0
    %v406 = vadd.f32 0.0, %v405
    %v407 = vpop.f32.mrf.mxu0
    %v408 = vadd.f32 0.0, %v407
    %v409 = vpop.f32.mrf.mxu0
    %v410 = vadd.f32 0.0, %v409
    %411 = vmatprep.mubr.bf16.mxu0 0
    %412 = vmatmul.mubr.bf16.gmra.mxu0 %v344
    %v413 = vpop.f32.mrf.mxu0
    %v414 = vadd.f32 0.0, %v413
    %v415 = vpop.f32.mrf.mxu0
    %v416 = vadd.f32 0.0, %v415
    %v417 = vpop.f32.mrf.mxu0
    %v418 = vadd.f32 0.0, %v417
    %v419 = vpop.f32.mrf.mxu0
    %v420 = vadd.f32 0.0, %v419
    %421 = vmatprep.mubr.bf16.mxu0 0
    %422 = vmatmul.mubr.bf16.gmra.mxu0 %v345
    %v423 = vpop.f32.mrf.mxu0
    %v424 = vadd.f32 0.0, %v423
    %v425 = vpop.f32.mrf.mxu0
    %v426 = vadd.f32 0.0, %v425
    %v427 = vpop.f32.mrf.mxu0
    %v428 = vadd.f32 0.0, %v427
    %v429 = vpop.f32.mrf.mxu0
    %v430 = vadd.f32 0.0, %v429
    %431 = vmatprep.mubr.bf16.mxu0 0
    %432 = vmatmul.mubr.bf16.gmra.mxu0 %v346
    %v433 = vpop.f32.mrf.mxu0
    %v434 = vadd.f32 0.0, %v433
    %v435 = vpop.f32.mrf.mxu0
    %v436 = vadd.f32 0.0, %v435
    %v437 = vpop.f32.mrf.mxu0
    %v438 = vadd.f32 0.0, %v437
    %v439 = vpop.f32.mrf.mxu0
    %v440 = vadd.f32 0.0, %v439
    %441 = vmatprep.mubr.bf16.mxu0 0
    %442 = vmatmul.mubr.bf16.gmra.mxu0 %v347
    %v443 = vpop.f32.mrf.mxu0
    %v444 = vadd.f32 0.0, %v443
    %v445 = vpop.f32.mrf.mxu0
    %v446 = vadd.f32 0.0, %v445
    %v447 = vpop.f32.mrf.mxu0
    %v448 = vadd.f32 0.0, %v447
    %v449 = vpop.f32.mrf.mxu0
    %v450 = vadd.f32 0.0, %v449
    %451 = vmatprep.mubr.bf16.mxu0 0
    %452 = vmatmul.mubr.bf16.gmra.mxu0 %v348
    %v453 = vpop.f32.mrf.mxu0
    %v454 = vadd.f32 0.0, %v453
    %v455 = vpop.f32.mrf.mxu0
    %v456 = vadd.f32 0.0, %v455
    %v457 = vpop.f32.mrf.mxu0
    %v458 = vadd.f32 0.0, %v457
    %v459 = vpop.f32.mrf.mxu0
    %v460 = vadd.f32 0.0, %v459
    %461 = vdwg.mxu0
    %v462 = vadd.f32 %v76, %v239
    %v463 = vadd.f32 %v77, %v241
    %v464 = vadd.f32 %v78, %v243
    %v465 = vadd.f32 %v79, %v245
    %v466 = vadd.f32 %v80, %v249
    %v467 = vadd.f32 %v81, %v251
    %v468 = vadd.f32 %v82, %v253
    %v469 = vadd.f32 %v83, %v255
    %v470 = vadd.f32 %v84, %v259
    %v471 = vadd.f32 %v85, %v261
    %v472 = vadd.f32 %v86, %v263
    %v473 = vadd.f32 %v87, %v265
    %v474 = vadd.f32 %v88, %v269
    %v475 = vadd.f32 %v89, %v271
    %v476 = vadd.f32 %v90, %v273
    %v477 = vadd.f32 %v91, %v275
    %v478 = vadd.f32 %v92, %v279
    %v479 = vadd.f32 %v93, %v281
    %v480 = vadd.f32 %v94, %v283
    %v481 = vadd.f32 %v95, %v285
    %v482 = vadd.f32 %v96, %v289
    %v483 = vadd.f32 %v97, %v291
    %v484 = vadd.f32 %v98, %v293
    %v485 = vadd.f32 %v99, %v295
    %v486 = vadd.f32 %v100, %v299
    %v487 = vadd.f32 %v101, %v301
    %v488 = vadd.f32 %v102, %v303
    %v489 = vadd.f32 %v103, %v305
    %v490 = vadd.f32 %v104, %v309
    %v491 = vadd.f32 %v105, %v311
    %v492 = vadd.f32 %v106, %v313
    %v493 = vadd.f32 %v107, %v315
    %v494 = vadd.f32 %v108, %v384
    %v495 = vadd.f32 %v109, %v386
    %v496 = vadd.f32 %v110, %v388
    %v497 = vadd.f32 %v111, %v390
    %v498 = vadd.f32 %v112, %v394
    %v499 = vadd.f32 %v113, %v396
    %v500 = vadd.f32 %v114, %v398
    %v501 = vadd.f32 %v115, %v400
    %v502 = vadd.f32 %v116, %v404
    %v503 = vadd.f32 %v117, %v406
    %v504 = vadd.f32 %v118, %v408
    %v505 = vadd.f32 %v119, %v410
    %v506 = vadd.f32 %v120, %v414
    %v507 = vadd.f32 %v121, %v416
    %v508 = vadd.f32 %v122, %v418
    %v509 = vadd.f32 %v123, %v420
    %v510 = vadd.f32 %v124, %v424
    %v511 = vadd.f32 %v125, %v426
    %v512 = vadd.f32 %v126, %v428
    %v513 = vadd.f32 %v127, %v430
    %v514 = vadd.f32 %v128, %v434
    %v515 = vadd.f32 %v129, %v436
    %v516 = vadd.f32 %v130, %v438
    %v517 = vadd.f32 %v131, %v440
    %v518 = vadd.f32 %v132, %v444
    %v519 = vadd.f32 %v133, %v446
    %v520 = vadd.f32 %v134, %v448
    %v521 = vadd.f32 %v135, %v450
    %v522 = vadd.f32 %v136, %v454
    %v523 = vadd.f32 %v137, %v456
    %v524 = vadd.f32 %v138, %v458
    %v525 = vadd.f32 %v139, %v460
    %v526 = vpack.c.bf16 %v388, %v384
    %v527 = vpack.c.bf16 %v390, %v386
    %v528 = vpack.c.bf16 %v398, %v394
    %v529 = vpack.c.bf16 %v400, %v396
    %v530 = vpack.c.bf16 %v408, %v404
    %v531 = vpack.c.bf16 %v410, %v406
    %v532 = vpack.c.bf16 %v418, %v414
    %v533 = vpack.c.bf16 %v420, %v416
    %v534 = vpack.c.bf16 %v428, %v424
    %v535 = vpack.c.bf16 %v430, %v426
    %v536 = vpack.c.bf16 %v438, %v434
    %v537 = vpack.c.bf16 %v440, %v436
    %v538 = vpack.c.bf16 %v448, %v444
    %v539 = vpack.c.bf16 %v450, %v446
    %v540 = vpack.c.bf16 %v458, %v454
    %v541 = vpack.c.bf16 %v460, %v456
    %542 = vmatprep.subr.bf16.mxu0 %v541
    %543 = vmatpush1.bf16.msra.mxu0 %v540
    %544 = vmatprep.subr.bf16.mxu0 %v539
    %545 = vmatpush1.bf16.msra.mxu0 %v538
    %546 = vmatprep.subr.bf16.mxu0 %v537
    %547 = vmatpush1.bf16.msra.mxu0 %v536
    %548 = vmatprep.subr.bf16.mxu0 %v535
    %549 = vmatpush1.bf16.msra.mxu0 %v534
    %550 = vmatprep.subr.bf16.mxu0 %v533
    %551 = vmatpush1.bf16.msra.mxu0 %v532
    %552 = vmatprep.subr.bf16.mxu0 %v531
    %553 = vmatpush1.bf16.msra.mxu0 %v530
    %554 = vmatprep.subr.bf16.mxu0 %v529
    %555 = vmatpush1.bf16.msra.mxu0 %v528
    %556 = vmatprep.subr.bf16.mxu0 %v527
    %557 = vmatpush1.bf16.msra.mxu0 %v526
    %558 = vmatprep.subr.bf16.mxu0 0
    %559 = vmatpush2.bf16.msra.mxu0 0
    %560 = vmatprep.subr.bf16.mxu0 0
    %561 = vmatpush2.bf16.msra.mxu0 0
    %562 = vmatprep.subr.bf16.mxu0 0
    %563 = vmatpush2.bf16.msra.mxu0 0
    %564 = vmatprep.subr.bf16.mxu0 0
    %565 = vmatpush2.bf16.msra.mxu0 0
    %566 = vmatprep.subr.bf16.mxu0 0
    %567 = vmatpush2.bf16.msra.mxu0 0
    %568 = vmatprep.subr.bf16.mxu0 0
    %569 = vmatpush2.bf16.msra.mxu0 0
    %570 = vmatprep.subr.bf16.mxu0 0
    %571 = vmatpush2.bf16.msra.mxu0 0
    %572 = vmatprep.subr.bf16.mxu0 0
    %573 = vmatpush2.bf16.msra.mxu0 0
    %574 = vmatprep.mubr.bf16.mxu0 0
    %575 = vmatmul.mubr.bf16.gmra.mxu0 %v188
    %v576 = vpop.f32.mrf.mxu0
    %v577 = vadd.f32 0.0, %v576
    %v578 = vpop.f32.mrf.mxu0
    %v579 = vadd.f32 0.0, %v578
    %v580 = vpop.f32.mrf.mxu0
    %v581 = vadd.f32 0.0, %v580
    %v582 = vpop.f32.mrf.mxu0
    %v583 = vadd.f32 0.0, %v582
    %584 = vmatprep.mubr.bf16.mxu0 0
    %585 = vmatmul.mubr.bf16.gmra.mxu0 %v189
    %v586 = vpop.f32.mrf.mxu0
    %v587 = vadd.f32 0.0, %v586
    %v588 = vpop.f32.mrf.mxu0
    %v589 = vadd.f32 0.0, %v588
    %v590 = vpop.f32.mrf.mxu0
    %v591 = vadd.f32 0.0, %v590
    %v592 = vpop.f32.mrf.mxu0
    %v593 = vadd.f32 0.0, %v592
    %594 = vmatprep.mubr.bf16.mxu0 0
    %595 = vmatmul.mubr.bf16.gmra.mxu0 %v190
    %v596 = vpop.f32.mrf.mxu0
    %v597 = vadd.f32 0.0, %v596
    %v598 = vpop.f32.mrf.mxu0
    %v599 = vadd.f32 0.0, %v598
    %v600 = vpop.f32.mrf.mxu0
    %v601 = vadd.f32 0.0, %v600
    %v602 = vpop.f32.mrf.mxu0
    %v603 = vadd.f32 0.0, %v602
    %604 = vmatprep.mubr.bf16.mxu0 0
    %605 = vmatmul.mubr.bf16.gmra.mxu0 %v191
    %v606 = vpop.f32.mrf.mxu0
    %v607 = vadd.f32 0.0, %v606
    %v608 = vpop.f32.mrf.mxu0
    %v609 = vadd.f32 0.0, %v608
    %v610 = vpop.f32.mrf.mxu0
    %v611 = vadd.f32 0.0, %v610
    %v612 = vpop.f32.mrf.mxu0
    %v613 = vadd.f32 0.0, %v612
    %614 = vmatprep.mubr.bf16.mxu0 0
    %615 = vmatmul.mubr.bf16.gmra.mxu0 %v192
    %v616 = vpop.f32.mrf.mxu0
    %v617 = vadd.f32 0.0, %v616
    %v618 = vpop.f32.mrf.mxu0
    %v619 = vadd.f32 0.0, %v618
    %v620 = vpop.f32.mrf.mxu0
    %v621 = vadd.f32 0.0, %v620
    %v622 = vpop.f32.mrf.mxu0
    %v623 = vadd.f32 0.0, %v622
    %624 = vmatprep.mubr.bf16.mxu0 0
    %625 = vmatmul.mubr.bf16.gmra.mxu0 %v193
    %v626 = vpop.f32.mrf.mxu0
    %v627 = vadd.f32 0.0, %v626
    %v628 = vpop.f32.mrf.mxu0
    %v629 = vadd.f32 0.0, %v628
    %v630 = vpop.f32.mrf.mxu0
    %v631 = vadd.f32 0.0, %v630
    %v632 = vpop.f32.mrf.mxu0
    %v633 = vadd.f32 0.0, %v632
    %634 = vmatprep.mubr.bf16.mxu0 0
    %635 = vmatmul.mubr.bf16.gmra.mxu0 %v194
    %v636 = vpop.f32.mrf.mxu0
    %v637 = vadd.f32 0.0, %v636
    %v638 = vpop.f32.mrf.mxu0
    %v639 = vadd.f32 0.0, %v638
    %v640 = vpop.f32.mrf.mxu0
    %v641 = vadd.f32 0.0, %v640
    %v642 = vpop.f32.mrf.mxu0
    %v643 = vadd.f32 0.0, %v642
    %644 = vmatprep.mubr.bf16.mxu0 0
    %645 = vmatmul.mubr.bf16.gmra.mxu0 %v195
    %v646 = vpop.f32.mrf.mxu0
    %v647 = vadd.f32 0.0, %v646
    %v648 = vpop.f32.mrf.mxu0
    %v649 = vadd.f32 0.0, %v648
    %v650 = vpop.f32.mrf.mxu0
    %v651 = vadd.f32 0.0, %v650
    %v652 = vpop.f32.mrf.mxu0
    %v653 = vadd.f32 0.0, %v652
    %654 = vdwg.mxu0
    %v655 = vpack.c.bf16 %v243, %v239
    %v656 = vpack.c.bf16 %v245, %v241
    %v657 = vpack.c.bf16 %v253, %v249
    %v658 = vpack.c.bf16 %v255, %v251
    %v659 = vpack.c.bf16 %v263, %v259
    %v660 = vpack.c.bf16 %v265, %v261
    %v661 = vpack.c.bf16 %v273, %v269
    %v662 = vpack.c.bf16 %v275, %v271
    %v663 = vpack.c.bf16 %v283, %v279
    %v664 = vpack.c.bf16 %v285, %v281
    %v665 = vpack.c.bf16 %v293, %v289
    %v666 = vpack.c.bf16 %v295, %v291
    %v667 = vpack.c.bf16 %v303, %v299
    %v668 = vpack.c.bf16 %v305, %v301
    %v669 = vpack.c.bf16 %v313, %v309
    %v670 = vpack.c.bf16 %v315, %v311
    %671 = vmatprep.subr.bf16.mxu0 %v670
    %672 = vmatpush1.bf16.msra.mxu0 %v669
    %673 = vmatprep.subr.bf16.mxu0 %v668
    %674 = vmatpush1.bf16.msra.mxu0 %v667
    %675 = vmatprep.subr.bf16.mxu0 %v666
    %676 = vmatpush1.bf16.msra.mxu0 %v665
    %677 = vmatprep.subr.bf16.mxu0 %v664
    %678 = vmatpush1.bf16.msra.mxu0 %v663
    %679 = vmatprep.subr.bf16.mxu0 %v662
    %680 = vmatpush1.bf16.msra.mxu0 %v661
    %681 = vmatprep.subr.bf16.mxu0 %v660
    %682 = vmatpush1.bf16.msra.mxu0 %v659
    %683 = vmatprep.subr.bf16.mxu0 %v658
    %684 = vmatpush1.bf16.msra.mxu0 %v657
    %685 = vmatprep.subr.bf16.mxu0 %v656
    %686 = vmatpush1.bf16.msra.mxu0 %v655
    %687 = vmatprep.subr.bf16.mxu0 0
    %688 = vmatpush2.bf16.msra.mxu0 0
    %689 = vmatprep.subr.bf16.mxu0 0
    %690 = vmatpush2.bf16.msra.mxu0 0
    %691 = vmatprep.subr.bf16.mxu0 0
    %692 = vmatpush2.bf16.msra.mxu0 0
    %693 = vmatprep.subr.bf16.mxu0 0
    %694 = vmatpush2.bf16.msra.mxu0 0
    %695 = vmatprep.subr.bf16.mxu0 0
    %696 = vmatpush2.bf16.msra.mxu0 0
    %697 = vmatprep.subr.bf16.mxu0 0
    %698 = vmatpush2.bf16.msra.mxu0 0
    %699 = vmatprep.subr.bf16.mxu0 0
    %700 = vmatpush2.bf16.msra.mxu0 0
    %701 = vmatprep.subr.bf16.mxu0 0
    %702 = vmatpush2.bf16.msra.mxu0 0
    %703 = vmatprep.mubr.bf16.mxu0 0
    %704 = vmatmul.mubr.bf16.gmra.mxu0 %v341
    %v705 = vpop.f32.mrf.mxu0
    %v706 = vadd.f32 0.0, %v705
    %v707 = vpop.f32.mrf.mxu0
    %v708 = vadd.f32 0.0, %v707
    %v709 = vpop.f32.mrf.mxu0
    %v710 = vadd.f32 0.0, %v709
    %v711 = vpop.f32.mrf.mxu0
    %v712 = vadd.f32 0.0, %v711
    %713 = vmatprep.mubr.bf16.mxu0 0
    %714 = vmatmul.mubr.bf16.gmra.mxu0 %v342
    %v715 = vpop.f32.mrf.mxu0
    %v716 = vadd.f32 0.0, %v715
    %v717 = vpop.f32.mrf.mxu0
    %v718 = vadd.f32 0.0, %v717
    %v719 = vpop.f32.mrf.mxu0
    %v720 = vadd.f32 0.0, %v719
    %v721 = vpop.f32.mrf.mxu0
    %v722 = vadd.f32 0.0, %v721
    %723 = vmatprep.mubr.bf16.mxu0 0
    %724 = vmatmul.mubr.bf16.gmra.mxu0 %v343
    %v725 = vpop.f32.mrf.mxu0
    %v726 = vadd.f32 0.0, %v725
    %v727 = vpop.f32.mrf.mxu0
    %v728 = vadd.f32 0.0, %v727
    %v729 = vpop.f32.mrf.mxu0
    %v730 = vadd.f32 0.0, %v729
    %v731 = vpop.f32.mrf.mxu0
    %v732 = vadd.f32 0.0, %v731
    %733 = vmatprep.mubr.bf16.mxu0 0
    %734 = vmatmul.mubr.bf16.gmra.mxu0 %v344
    %v735 = vpop.f32.mrf.mxu0
    %v736 = vadd.f32 0.0, %v735
    %v737 = vpop.f32.mrf.mxu0
    %v738 = vadd.f32 0.0, %v737
    %v739 = vpop.f32.mrf.mxu0
    %v740 = vadd.f32 0.0, %v739
    %v741 = vpop.f32.mrf.mxu0
    %v742 = vadd.f32 0.0, %v741
    %743 = vmatprep.mubr.bf16.mxu0 0
    %744 = vmatmul.mubr.bf16.gmra.mxu0 %v345
    %v745 = vpop.f32.mrf.mxu0
    %v746 = vadd.f32 0.0, %v745
    %v747 = vpop.f32.mrf.mxu0
    %v748 = vadd.f32 0.0, %v747
    %v749 = vpop.f32.mrf.mxu0
    %v750 = vadd.f32 0.0, %v749
    %v751 = vpop.f32.mrf.mxu0
    %v752 = vadd.f32 0.0, %v751
    %753 = vmatprep.mubr.bf16.mxu0 0
    %754 = vmatmul.mubr.bf16.gmra.mxu0 %v346
    %v755 = vpop.f32.mrf.mxu0
    %v756 = vadd.f32 0.0, %v755
    %v757 = vpop.f32.mrf.mxu0
    %v758 = vadd.f32 0.0, %v757
    %v759 = vpop.f32.mrf.mxu0
    %v760 = vadd.f32 0.0, %v759
    %v761 = vpop.f32.mrf.mxu0
    %v762 = vadd.f32 0.0, %v761
    %763 = vmatprep.mubr.bf16.mxu0 0
    %764 = vmatmul.mubr.bf16.gmra.mxu0 %v347
    %v765 = vpop.f32.mrf.mxu0
    %v766 = vadd.f32 0.0, %v765
    %v767 = vpop.f32.mrf.mxu0
    %v768 = vadd.f32 0.0, %v767
    %v769 = vpop.f32.mrf.mxu0
    %v770 = vadd.f32 0.0, %v769
    %v771 = vpop.f32.mrf.mxu0
    %v772 = vadd.f32 0.0, %v771
    %773 = vmatprep.mubr.bf16.mxu0 0
    %774 = vmatmul.mubr.bf16.gmra.mxu0 %v348
    %v775 = vpop.f32.mrf.mxu0
    %v776 = vadd.f32 0.0, %v775
    %v777 = vpop.f32.mrf.mxu0
    %v778 = vadd.f32 0.0, %v777
    %v779 = vpop.f32.mrf.mxu0
    %v780 = vadd.f32 0.0, %v779
    %v781 = vpop.f32.mrf.mxu0
    %v782 = vadd.f32 0.0, %v781
    %783 = vdwg.mxu0
    %v784 = vadd.f32 %v462, %v577
    %v785 = vadd.f32 %v463, %v579
    %v786 = vadd.f32 %v464, %v581
    %v787 = vadd.f32 %v465, %v583
    %v788 = vadd.f32 %v466, %v587
    %v789 = vadd.f32 %v467, %v589
    %v790 = vadd.f32 %v468, %v591
    %v791 = vadd.f32 %v469, %v593
    %v792 = vadd.f32 %v470, %v597
    %v793 = vadd.f32 %v471, %v599
    %v794 = vadd.f32 %v472, %v601
    %v795 = vadd.f32 %v473, %v603
    %v796 = vadd.f32 %v474, %v607
    %v797 = vadd.f32 %v475, %v609
    %v798 = vadd.f32 %v476, %v611
    %v799 = vadd.f32 %v477, %v613
    %v800 = vadd.f32 %v478, %v617
    %v801 = vadd.f32 %v479, %v619
    %v802 = vadd.f32 %v480, %v621
    %v803 = vadd.f32 %v481, %v623
    %v804 = vadd.f32 %v482, %v627
    %v805 = vadd.f32 %v483, %v629
    %v806 = vadd.f32 %v484, %v631
    %v807 = vadd.f32 %v485, %v633
    %v808 = vadd.f32 %v486, %v637
    %v809 = vadd.f32 %v487, %v639
    %v810 = vadd.f32 %v488, %v641
    %v811 = vadd.f32 %v489, %v643
    %v812 = vadd.f32 %v490, %v647
    %v813 = vadd.f32 %v491, %v649
    %v814 = vadd.f32 %v492, %v651
    %v815 = vadd.f32 %v493, %v653
    %v816 = vadd.f32 %v494, %v706
    %v817 = vadd.f32 %v495, %v708
    %v818 = vadd.f32 %v496, %v710
    %v819 = vadd.f32 %v497, %v712
    %v820 = vadd.f32 %v498, %v716
    %v821 = vadd.f32 %v499, %v718
    %v822 = vadd.f32 %v500, %v720
    %v823 = vadd.f32 %v501, %v722
    %v824 = vadd.f32 %v502, %v726
    %v825 = vadd.f32 %v503, %v728
    %v826 = vadd.f32 %v504, %v730
    %v827 = vadd.f32 %v505, %v732
    %v828 = vadd.f32 %v506, %v736
    %v829 = vadd.f32 %v507, %v738
    %v830 = vadd.f32 %v508, %v740
    %v831 = vadd.f32 %v509, %v742
    %v832 = vadd.f32 %v510, %v746
    %v833 = vadd.f32 %v511, %v748
    %v834 = vadd.f32 %v512, %v750
    %v835 = vadd.f32 %v513, %v752
    %v836 = vadd.f32 %v514, %v756
    %v837 = vadd.f32 %v515, %v758
    %v838 = vadd.f32 %v516, %v760
    %v839 = vadd.f32 %v517, %v762
    %v840 = vadd.f32 %v518, %v766
    %v841 = vadd.f32 %v519, %v768
    %v842 = vadd.f32 %v520, %v770
    %v843 = vadd.f32 %v521, %v772
    %v844 = vadd.f32 %v522, %v776
    %v845 = vadd.f32 %v523, %v778
    %v846 = vadd.f32 %v524, %v780
    %v847 = vadd.f32 %v525, %v782
    %v848 = vmul.f32 %v784, 0.33333334
    %v849 = vmul.f32 %v785, 0.33333334
    %v850 = vmul.f32 %v786, 0.33333334
    %v851 = vmul.f32 %v787, 0.33333334
    %v852 = vmul.f32 %v788, 0.33333334
    %v853 = vmul.f32 %v789, 0.33333334
    %v854 = vmul.f32 %v790, 0.33333334
    %v855 = vmul.f32 %v791, 0.33333334
    %v856 = vmul.f32 %v792, 0.33333334
    %v857 = vmul.f32 %v793, 0.33333334
    %v858 = vmul.f32 %v794, 0.33333334
    %v859 = vmul.f32 %v795, 0.33333334
    %v860 = vmul.f32 %v796, 0.33333334
    %v861 = vmul.f32 %v797, 0.33333334
    %v862 = vmul.f32 %v798, 0.33333334
    %v863 = vmul.f32 %v799, 0.33333334
    %v864 = vmul.f32 %v800, 0.33333334
    %v865 = vmul.f32 %v801, 0.33333334
    %v866 = vmul.f32 %v802, 0.33333334
    %v867 = vmul.f32 %v803, 0.33333334
    %v868 = vmul.f32 %v804, 0.33333334
    %v869 = vmul.f32 %v805, 0.33333334
    %v870 = vmul.f32 %v806, 0.33333334
    %v871 = vmul.f32 %v807, 0.33333334
    %v872 = vmul.f32 %v808, 0.33333334
    %v873 = vmul.f32 %v809, 0.33333334
    %v874 = vmul.f32 %v810, 0.33333334
    %v875 = vmul.f32 %v811, 0.33333334
    %v876 = vmul.f32 %v812, 0.33333334
    %v877 = vmul.f32 %v813, 0.33333334
    %v878 = vmul.f32 %v814, 0.33333334
    %v879 = vmul.f32 %v815, 0.33333334
    %880 = vst [vmem:[#allocation8] sm:$0xff] %v848
    %881 = vst [vmem:[#allocation8 + $0x8] sm:$0xff] %v849
    %882 = vst [vmem:[#allocation8 + $0x10] sm:$0xff] %v850
    %883 = vst [vmem:[#allocation8 + $0x18] sm:$0xff] %v851
    %884 = vst [vmem:[#allocation8 + $0x20] sm:$0xff] %v852
    %885 = vst [vmem:[#allocation8 + $0x28] sm:$0xff] %v853
    %886 = vst [vmem:[#allocation8 + $0x30] sm:$0xff] %v854
    %887 = vst [vmem:[#allocation8 + $0x38] sm:$0xff] %v855
    %888 = vst [vmem:[#allocation8 + $0x40] sm:$0xff] %v856
    %889 = vst [vmem:[#allocation8 + $0x48] sm:$0xff] %v857
    %890 = vst [vmem:[#allocation8 + $0x50] sm:$0xff] %v858
    %891 = vst [vmem:[#allocation8 + $0x58] sm:$0xff] %v859
    %892 = vst [vmem:[#allocation8 + $0x60] sm:$0xff] %v860
    %893 = vst [vmem:[#allocation8 + $0x68] sm:$0xff] %v861
    %894 = vst [vmem:[#allocation8 + $0x70] sm:$0xff] %v862
    %895 = vst [vmem:[#allocation8 + $0x78] sm:$0xff] %v863
    %896 = vst [vmem:[#allocation8 + $0x80] sm:$0xff] %v864
    %897 = vst [vmem:[#allocation8 + $0x88] sm:$0xff] %v865
    %898 = vst [vmem:[#allocation8 + $0x90] sm:$0xff] %v866
    %899 = vst [vmem:[#allocation8 + $0x98] sm:$0xff] %v867
    %900 = vst [vmem:[#allocation8 + $0xa0] sm:$0xff] %v868
    %901 = vst [vmem:[#allocation8 + $0xa8] sm:$0xff] %v869
    %902 = vst [vmem:[#allocation8 + $0xb0] sm:$0xff] %v870
    %903 = vst [vmem:[#allocation8 + $0xb8] sm:$0xff] %v871
    %904 = vst [vmem:[#allocation8 + $0xc0] sm:$0xff] %v872
    %905 = vst [vmem:[#allocation8 + $0xc8] sm:$0xff] %v873
    %906 = vst [vmem:[#allocation8 + $0xd0] sm:$0xff] %v874
    %907 = vst [vmem:[#allocation8 + $0xd8] sm:$0xff] %v875
    %908 = vst [vmem:[#allocation8 + $0xe0] sm:$0xff] %v876
    %909 = vst [vmem:[#allocation8 + $0xe8] sm:$0xff] %v877
    %910 = vst [vmem:[#allocation8 + $0xf0] sm:$0xff] %v878
    %911 = vst [vmem:[#allocation8 + $0xf8] sm:$0xff] %v879
    %v912 = vmul.f32 %v816, 0.33333334
    %v913 = vmul.f32 %v817, 0.33333334
    %v914 = vmul.f32 %v818, 0.33333334
    %v915 = vmul.f32 %v819, 0.33333334
    %v916 = vmul.f32 %v820, 0.33333334
    %v917 = vmul.f32 %v821, 0.33333334
    %v918 = vmul.f32 %v822, 0.33333334
    %v919 = vmul.f32 %v823, 0.33333334
    %v920 = vmul.f32 %v824, 0.33333334
    %v921 = vmul.f32 %v825, 0.33333334
    %v922 = vmul.f32 %v826, 0.33333334
    %v923 = vmul.f32 %v827, 0.33333334
    %v924 = vmul.f32 %v828, 0.33333334
    %v925 = vmul.f32 %v829, 0.33333334
    %v926 = vmul.f32 %v830, 0.33333334
    %v927 = vmul.f32 %v831, 0.33333334
    %v928 = vmul.f32 %v832, 0.33333334
    %v929 = vmul.f32 %v833, 0.33333334
    %v930 = vmul.f32 %v834, 0.33333334
    %v931 = vmul.f32 %v835, 0.33333334
    %v932 = vmul.f32 %v836, 0.33333334
    %v933 = vmul.f32 %v837, 0.33333334
    %v934 = vmul.f32 %v838, 0.33333334
    %v935 = vmul.f32 %v839, 0.33333334
    %v936 = vmul.f32 %v840, 0.33333334
    %v937 = vmul.f32 %v841, 0.33333334
    %v938 = vmul.f32 %v842, 0.33333334
    %v939 = vmul.f32 %v843, 0.33333334
    %v940 = vmul.f32 %v844, 0.33333334
    %v941 = vmul.f32 %v845, 0.33333334
    %v942 = vmul.f32 %v846, 0.33333334
    %v943 = vmul.f32 %v847, 0.33333334
    %944 = vst [vmem:[#allocation9] sm:$0xff] %v912
    %945 = vst [vmem:[#allocation9 + $0x8] sm:$0xff] %v913
    %946 = vst [vmem:[#allocation9 + $0x10] sm:$0xff] %v914
    %947 = vst [vmem:[#allocation9 + $0x18] sm:$0xff] %v915
    %948 = vst [vmem:[#allocation9 + $0x20] sm:$0xff] %v916
    %949 = vst [vmem:[#allocation9 + $0x28] sm:$0xff] %v917
    %950 = vst [vmem:[#allocation9 + $0x30] sm:$0xff] %v918
    %951 = vst [vmem:[#allocation9 + $0x38] sm:$0xff] %v919
    %952 = vst [vmem:[#allocation9 + $0x40] sm:$0xff] %v920
    %953 = vst [vmem:[#allocation9 + $0x48] sm:$0xff] %v921
    %954 = vst [vmem:[#allocation9 + $0x50] sm:$0xff] %v922
    %955 = vst [vmem:[#allocation9 + $0x58] sm:$0xff] %v923
    %956 = vst [vmem:[#allocation9 + $0x60] sm:$0xff] %v924
    %957 = vst [vmem:[#allocation9 + $0x68] sm:$0xff] %v925
    %958 = vst [vmem:[#allocation9 + $0x70] sm:$0xff] %v926
    %959 = vst [vmem:[#allocation9 + $0x78] sm:$0xff] %v927
    %960 = vst [vmem:[#allocation9 + $0x80] sm:$0xff] %v928
    %961 = vst [vmem:[#allocation9 + $0x88] sm:$0xff] %v929
    %962 = vst [vmem:[#allocation9 + $0x90] sm:$0xff] %v930
    %963 = vst [vmem:[#allocation9 + $0x98] sm:$0xff] %v931
    %964 = vst [vmem:[#allocation9 + $0xa0] sm:$0xff] %v932
    %965 = vst [vmem:[#allocation9 + $0xa8] sm:$0xff] %v933
    %966 = vst [vmem:[#allocation9 + $0xb0] sm:$0xff] %v934
    %967 = vst [vmem:[#allocation9 + $0xb8] sm:$0xff] %v935
    %968 = vst [vmem:[#allocation9 + $0xc0] sm:$0xff] %v936
    %969 = vst [vmem:[#allocation9 + $0xc8] sm:$0xff] %v937
    %970 = vst [vmem:[#allocation9 + $0xd0] sm:$0xff] %v938
    %971 = vst [vmem:[#allocation9 + $0xd8] sm:$0xff] %v939
    %972 = vst [vmem:[#allocation9 + $0xe0] sm:$0xff] %v940
    %973 = vst [vmem:[#allocation9 + $0xe8] sm:$0xff] %v941
    %974 = vst [vmem:[#allocation9 + $0xf0] sm:$0xff] %v942
    %975 = vst [vmem:[#allocation9 + $0xf8] sm:$0xff] %v943
    // Predicated region
    $region26: #{tpu_custom_call.1} parent=1 // pred_check
      _
    $region27: #{tpu_custom_call.1} parent=1 // pred_check_branch
      %977 = sbr.rel (0) target = $region29
    $region28: #{tpu_custom_call.1} parent=1 // pred_region
      %s979 = ssub.s32 4096, 4096
      %980 = vsyncadd [#allocation4], %s979
      %s981 = sshll.u32 [#allocation8], 4
      %s982 = int_to_ptr.vmem [resolvable:$true] %s981
      %987 = dma.vmem_to_hbm [thread:$0]  %s982, 4096, %s3, [#allocation4], 256, 256, 16
    $region29: #{tpu_custom_call.1} parent=1 // pred_fallthru
      _
    // Predicated region
    $region30: #{tpu_custom_call.1} parent=1 // pred_check
      _
    $region31: #{tpu_custom_call.1} parent=1 // pred_check_branch
      %989 = sbr.rel (0) target = $region33
    $region32: #{tpu_custom_call.1} parent=1 // pred_region
      %s991 = ssub.s32 4096, 4096
      %992 = vsyncadd [#allocation10], %s991
      %s993 = sshll.u32 [#allocation9], 4
      %s994 = int_to_ptr.vmem [resolvable:$true] %s993
      %999 = dma.vmem_to_hbm [thread:$0]  %s994, 4096, %s4, [#allocation10], 256, 256, 16
    $region33: #{tpu_custom_call.1} parent=1 // pred_fallthru
      _
    // Predicated region
    $region34: #{tpu_custom_call.1} parent=1 // pred_check
      _
    $region35: #{tpu_custom_call.1} parent=1 // pred_check_branch
      %1001 = sbr.rel (0) target = $region37
    $region36: #{tpu_custom_call.1} parent=1 // pred_region
      %1002 = dma.done [#allocation4], 4096
    $region37: #{tpu_custom_call.1} parent=1 // pred_fallthru
      _
    // Predicated region
    $region38: #{tpu_custom_call.1} parent=1 // pred_check
      _
    $region39: #{tpu_custom_call.1} parent=1 // pred_check_branch
      %1004 = sbr.rel (0) target = $region41
    $region40: #{tpu_custom_call.1} parent=1 // pred_region
      %1005 = dma.done [#allocation10], 4096
    $region41: #{tpu_custom_call.1} parent=1 // pred_fallthru
      _
    %1006 = vsyncpa [#allocation3], 1
    %1007 = vsyncpa [#allocation6], 1
    %1008 = vsyncpa [#allocation4], 1
    %1009 = vsyncpa [#allocation10], 1

</llo_original>
